<compile_context>
chip_gen: v7x
topology: tpu7x:2x2x1
jax: 0.10.0
libtpu: 0.0.40
codegen_flags: <defaults>
</compile_context>

<pallas_src>
import jax
import jax.numpy as jnp
from jax.experimental import pallas as pl
from jax.experimental.pallas import tpu as pltpu

EPS = 1e-6  # matches LayerNorm(features, eps=1e-06)


def _round_up(n, m):
    return ((n + m - 1) // m) * m


def _single_buffered_spec(block_shape, index_map):
    """Grid-invariant operand: fetched once; request single buffering so it does
    not waste a second VMEM buffer.  Falls back gracefully if this Pallas
    version does not expose pipeline_mode / Buffered."""
    try:
        return pl.BlockSpec(block_shape, index_map, pipeline_mode=pl.Buffered(1))
    except (TypeError, AttributeError):
        return pl.BlockSpec(block_shape, index_map)


def _vmem_capacity_bytes():
    """Generation-aware physical VMEM per TensorCore (128 MiB v5e/v6e, 64 MiB v7x)."""
    try:
        cap = int(getattr(pltpu.get_tpu_info(), "vmem_capacity_bytes", 0))
        if cap > 0:
            return cap
    except Exception:
        pass
    return 64 << 20  # conservative fallback (v7x per-TC)


def _choose_tile_k(d, w_budget):
    """Keep the bf16 weight fully VMEM-resident whenever it fits the
    generation-aware budget (fetched ONCE for the whole kernel); otherwise
    stream 128-aligned K chunks whose double-buffer stays within the budget."""
    if d * d * 2 <= w_budget:
        return d
    for tk in (2048, 1024, 512, 256, 128):
        if d % tk == 0 and 2 * tk * d * 2 <= w_budget:
            return tk
    return d


def _estimate_vmem(tile_rows, tile_k, d, num_k, x_itemsize, out_itemsize,
                   acc_in_out):
    """VMEM residency estimate for the chosen tiling, including sublane/lane
    padding of the small operands and a margin for the k==0 f32 temporaries."""
    est = 0
    if num_k > 1:
        est += 2 * tile_rows * tile_k * x_itemsize   # x K-chunks (double-buffered)
        est += 2 * tile_rows * d * x_itemsize        # x full rows (stats + residual)
        est += 2 * tile_k * d * 2                    # streamed bf16 weight blocks
        est += 2 * 2 * 8 * tile_k * 4                # gamma/beta chunks (sublane-padded)
    else:
        est += 2 * tile_rows * d * x_itemsize        # x rows (double-buffered)
        est += d * d * 2                             # resident bf16 weight (1 buffer)
        est += 2 * 8 * d * 4                         # gamma/beta (single-buffered)
    est += 8 * d * 4                                 # bias (single-buffered)
    est += 2 * tile_rows * d * out_itemsize          # output rows (double-buffered)
    est += 2 * tile_rows * 128 * 4                   # mean / inv_std (lane-padded)
    if not acc_in_out:
        est += tile_rows * d * 4                     # f32 accumulator scratch
    est += tile_rows * d * 4                         # k==0 f32 temporaries margin
    return int(est)


def _make_kernel(num_k, acc_in_out):
    """Grid = (row_tiles, k_tiles), K innermost ('arbitrary').

    k == 0 : full-row LayerNorm statistics -> (TM,1) mean / inv_std scratches;
             accumulator initialized with residual x + Linear bias.
    every k: just-in-time LayerNorm of the (TM, TK) chunk (tiny VPU work) ->
             bf16, (TM, TK) @ (TK, D) f32-accumulate on the MXU.
    last k : cast-out only when the accumulator is a scratch (bf16 output);
             for f32 output the accumulator IS o_ref (block invariant over K).
    """
    def kernel(*refs):
        if num_k > 1:
            (x_chunk_ref, x_full_ref, gamma_ref, beta_ref,
             w_ref, bias_ref, o_ref, *scratch) = refs
        else:
            (x_full_ref, gamma_ref, beta_ref,
             w_ref, bias_ref, o_ref, *scratch) = refs
            x_chunk_ref = x_full_ref
        mean_ref, inv_ref = scratch[0], scratch[1]
        acc_ref = o_ref if acc_in_out else scratch[2]

        k = pl.program_id(1)
        d = x_full_ref.shape[-1]

        @pl.when(k == 0)
        def _():
            # torch semantics of the module's LayerNorm: unbiased std (d-1),
            # normalize by (std + eps).  Exact reciprocal: only (TM,1) values.
            xf = x_full_ref[...].astype(jnp.float32)
            mean = jnp.mean(xf, axis=-1, keepdims=True)
            diff = xf - mean
            var = jnp.sum(diff * diff, axis=-1, keepdims=True) / (d - 1)
            mean_ref[...] = mean
            inv_ref[...] = 1.0 / (jnp.sqrt(var) + EPS)
            # Fold residual + Linear bias into the accumulator init: saves a
            # full (TM, D) store + reload + add at the last K step.
            acc_ref[...] = (xf + bias_ref[...]).astype(acc_ref.dtype)

        # Just-in-time LayerNorm of the current contraction chunk (no big bf16
        # scratch, no serialized normalize burst stalling the MXU at k==0).
        xc = x_chunk_ref[...].astype(jnp.float32)
        y = (gamma_ref[...] * ((xc - mean_ref[...]) * inv_ref[...])
             + beta_ref[...]).astype(jnp.bfloat16)

        # TODO(synk): nn.Dropout is identity in eval/inference mode; training
        #             dropout (pltpu.prng_seed / prng_random_bits) omitted.
        acc_ref[...] += jnp.dot(y, w_ref[...],
                                preferred_element_type=jnp.float32)

        if not acc_in_out:
            @pl.when(k == num_k - 1)
            def _():
                o_ref[...] = acc_ref[...].astype(o_ref.dtype)

    return kernel


def sublayer_connection(x, gamma, beta, w_t, bias, *, tile_rows=None, tile_k=None):
    """x: (B, S, D); gamma/beta/bias: (1, D); w_t: (D, D) = W.T of nn.Linear.

    Pass w_t already cast to bfloat16 (see __main__) to avoid a per-call D^2
    HBM cast op.  For production shapes use D % 128 == 0.
    """
    B, S, D = x.shape
    n_rows = B * S
    out_dtype = x.dtype
    x2 = x.reshape(n_rows, D)

    x_itemsize = jnp.dtype(x2.dtype).itemsize
    out_itemsize = jnp.dtype(out_dtype).itemsize
    acc_in_out = jnp.dtype(out_dtype) == jnp.dtype(jnp.float32)

    # ---- generation-aware VMEM budgets ------------------------------------
    vmem_cap = _vmem_capacity_bytes()
    vmem_budget = vmem_cap - (8 << 20)        # headroom: compiler scratch, sems
    w_budget = max(8 << 20, vmem_cap // 3)    # resident-W budget (~42 MiB on
                                              # 128 MiB chips, ~21 MiB on v7x)

    # ---- K (contraction) tiling --------------------------------------------
    if tile_k is None:
        tile_k = _choose_tile_k(D, w_budget)
    if tile_k != D and (D % tile_k != 0 or tile_k % 128 != 0):
        tile_k = D        # K chunks must be lane-aligned for the chunked specs
    num_k = D // tile_k

    # ---- row tiling ---------------------------------------------------------
    if tile_rows is None:
        if num_k == 1:
            tile_rows = 256
        else:
            # Streaming W: arithmetic intensity of the weight stream scales with
            # tile_rows (FLOPs/byte) -> large row tiles (v6e ridge ~655, v7x ~311).
            tile_rows = 1024 if vmem_cap >= (96 << 20) else 512
    tile_rows = _round_up(max(8, min(int(tile_rows), _round_up(n_rows, 8))), 8)
    # Shrink tiles (rather than clamping the limit) until the estimate fits.
    while tile_rows > 8 and _estimate_vmem(tile_rows, tile_k, D, num_k,
                                           x_itemsize, out_itemsize,
                                           acc_in_out) > vmem_budget:
        tile_rows = _round_up(max(8, tile_rows // 2), 8)

    est = _estimate_vmem(tile_rows, tile_k, D, num_k, x_itemsize, out_itemsize,
                         acc_in_out)
    vmem_limit = int(min(max(32 << 20, est + (8 << 20)), vmem_cap - (4 << 20)))

    # ---- ragged row count: pad to a tile multiple, slice after -------------
    padded_rows = pl.cdiv(n_rows, tile_rows) * tile_rows
    if padded_rows != n_rows:
        x2 = jnp.pad(x2, ((0, padded_rows - n_rows), (0, 0)))
    num_row_tiles = padded_rows // tile_rows

    # bf16 weight: half the HBM/VMEM bytes and the MXU's bf16 peak.  Cast only
    # if the caller did not pre-cast (keep the cast out of the hot path).
    w_bf16 = w_t if w_t.dtype == jnp.bfloat16 else w_t.astype(jnp.bfloat16)

    x_full_spec = pl.BlockSpec((tile_rows, D), lambda i, k: (i, 0))
    bias_spec = _single_buffered_spec((1, D), lambda i, k: (0, 0))

    if num_k == 1:
        # Weight + LN params are grid-invariant (fetched once) -> single-buffer.
        gb_spec = _single_buffered_spec((1, D), lambda i, k: (0, 0))
        w_spec = _single_buffered_spec((D, D), lambda i, k: (0, 0))
        in_specs = [x_full_spec, gb_spec, gb_spec, w_spec, bias_spec]
        operands = (x2, gamma, beta, w_bf16, bias)
    else:
        # Stream the weight along K; gamma/beta (and x, via a second chunked
        # view) follow the same K chunking so the kernel never needs a dynamic
        # lane-dim slice.
        gb_spec = pl.BlockSpec((1, tile_k), lambda i, k: (0, k))
        in_specs = [pl.BlockSpec((tile_rows, tile_k), lambda i, k: (i, k)),  # x chunk
                    x_full_spec,                                             # x (stats+residual)
                    gb_spec, gb_spec,                                        # gamma / beta
                    pl.BlockSpec((tile_k, D), lambda i, k: (k, 0)),          # W^T chunk
                    bias_spec]
        operands = (x2, x2, gamma, beta, w_bf16, bias)

    scratch_shapes = [pltpu.VMEM((tile_rows, 1), jnp.float32),   # LN mean
                      pltpu.VMEM((tile_rows, 1), jnp.float32)]   # 1/(std+eps)
    if not acc_in_out:
        scratch_shapes.append(pltpu.VMEM((tile_rows, D), jnp.float32))  # f32 acc

    out = pl.pallas_call(
        _make_kernel(num_k, acc_in_out),
        out_shape=jax.ShapeDtypeStruct((padded_rows, D), out_dtype),
        grid_spec=pltpu.PrefetchScalarGridSpec(
            num_scalar_prefetch=0,
            grid=(num_row_tiles, num_k),
            in_specs=in_specs,
            out_specs=pl.BlockSpec((tile_rows, D), lambda i, k: (i, 0)),
            scratch_shapes=scratch_shapes),
        compiler_params=pltpu.CompilerParams(
            dimension_semantics=("parallel", "arbitrary"),
            vmem_limit_bytes=vmem_limit),
    )(*operands)

    if padded_rows != n_rows:
        out = out[:n_rows]
    return out.reshape(B, S, D)


def reference(x2, gamma, beta, w_t, bias):
    """Pure-f32 reference for x + Linear(LayerNorm(x)) with torch-style LN."""
    xf = x2.astype(jnp.float32)
    mean = jnp.mean(xf, axis=-1, keepdims=True)
    diff = xf - mean
    var = jnp.sum(diff * diff, axis=-1, keepdims=True) / (xf.shape[-1] - 1)
    y = gamma * diff / (jnp.sqrt(var) + EPS) + beta
    z = y @ w_t.astype(jnp.float32) + bias
    return (xf + z).astype(x2.dtype)


def _maxerr(a, b):
    return float(jnp.max(jnp.abs(a.astype(jnp.float32) - b.astype(jnp.float32))))


if __name__ == "__main__":
    key = jax.random.PRNGKey(0)
    kx, kg, kb0, kw, kb, kxr, kx2, kg2, kb20, kw2, kb2 = jax.random.split(key, 11)

    # ---- case 1: module-sized demo (batch=2, seq=8, hidden=32) -------------
    B, S, D = 2, 8, 32
    x = jax.random.normal(kx, (B, S, D), dtype=jnp.float32)
    # LayerNorm params (a_2 init ones, b_2 zeros in the module; perturbed here
    # so the scale/shift path is actually exercised).
    gamma = 1.0 + 0.1 * jax.random.normal(kg, (1, D), dtype=jnp.float32)
    beta = 0.1 * jax.random.normal(kb0, (1, D), dtype=jnp.float32)
    # deterministic synthetic sublayer = Linear(D, D); store W^T as (D_in, D_out)
    w_t = jax.random.normal(kw, (D, D), dtype=jnp.float32) / jnp.sqrt(D)
    bias = 0.01 * jax.random.normal(kb, (1, D), dtype=jnp.float32)
    w_bf16 = w_t.astype(jnp.bfloat16)    # pre-cast ONCE, outside the call path

    ref1 = reference(x.reshape(-1, D), gamma, beta, w_t, bias).reshape(B, S, D)
    # 1a) default tiling (weight fully VMEM-resident, single K tile)
    out1 = jax.block_until_ready(sublayer_connection(x, gamma, beta, w_bf16, bias))
    # 1b) small row tiles -> multiple row tiles on the parallel axis
    out2 = jax.block_until_ready(
        sublayer_connection(x, gamma, beta, w_bf16, bias, tile_rows=8))
    # 1c) ragged row count (3*5 = 15 rows) -> padded tail path
    x_r = jax.random.normal(kxr, (3, 5, D), dtype=jnp.float32)
    ref_r = reference(x_r.reshape(-1, D), gamma, beta, w_t, bias).reshape(3, 5, D)
    out_r = jax.block_until_ready(sublayer_connection(x_r, gamma, beta, w_bf16, bias))

    # ---- case 2: K-streaming path (D=256, tile_k=128 -> num_k=2) -----------
    D2 = 256
    x_s = jax.random.normal(kx2, (2, 8, D2), dtype=jnp.float32)
    gamma2 = 1.0 + 0.1 * jax.random.normal(kg2, (1, D2), dtype=jnp.float32)
    beta2 = 0.1 * jax.random.normal(kb20, (1, D2), dtype=jnp.float32)
    w2 = jax.random.normal(kw2, (D2, D2), dtype=jnp.float32) / jnp.sqrt(D2)
    bias2 = 0.01 * jax.random.normal(kb2, (1, D2), dtype=jnp.float32)
    w2_bf16 = w2.astype(jnp.bfloat16)

    ref_s = reference(x_s.reshape(-1, D2), gamma2, beta2, w2, bias2).reshape(2, 8, D2)
    out_s = jax.block_until_ready(
        sublayer_connection(x_s, gamma2, beta2, w2_bf16, bias2, tile_k=128))

    # 2b) bf16 I/O -> exercises the f32-accumulator-scratch path
    x_bf = x_s.astype(jnp.bfloat16)
    ref_bf = reference(x_bf.reshape(-1, D2), gamma2, beta2, w2, bias2).reshape(2, 8, D2)
    out_bf = jax.block_until_ready(
        sublayer_connection(x_bf, gamma2, beta2, w2_bf16, bias2, tile_k=128))

    tol = 5e-2  # bf16 MXU operands vs a pure-f32 reference
    assert _maxerr(out1, ref1) < tol, "kernel mismatch (default tiling)"
    assert _maxerr(out2, ref1) < tol, "kernel mismatch (small row tiles)"
    assert _maxerr(out_r, ref_r) < tol, "kernel mismatch (ragged rows)"
    assert _maxerr(out_s, ref_s) < tol, "kernel mismatch (K-streaming path)"
    assert _maxerr(out_bf, ref_bf) < 1e-1, "kernel mismatch (bf16 I/O path)"

    print("KERNEL_OK")
</pallas_src>

<mosaic_0001>
module attributes {stable_mosaic.version = 11 : i64} {
  func.func @kernel(%arg0: i32, %arg1: i32, %arg2: memref<16x32xf32, #tpu.memory_space<vmem>>, %arg3: memref<1x32xf32, #tpu.memory_space<vmem>>, %arg4: memref<1x32xf32, #tpu.memory_space<vmem>>, %arg5: memref<32x32xbf16, #tpu.memory_space<vmem>>, %arg6: memref<1x32xf32, #tpu.memory_space<vmem>>, %arg7: memref<16x32xf32, #tpu.memory_space<vmem>>, %arg8: memref<16x1xf32, #tpu.memory_space<vmem>>, %arg9: memref<16x1xf32, #tpu.memory_space<vmem>>) attributes {dimension_semantics = [#tpu.dimension_semantics<parallel>, #tpu.dimension_semantics<arbitrary>], iteration_bounds = array<i64: 1, 1>, scalar_prefetch = 0 : i64, scratch_operands = 2 : i64, tpu.core_type = #tpu.core_type<tc>, window_params = [{transform_indices = @transform_0, window_bounds = array<i64: 16, 32>}, {pipeline_mode = #tpu.pipeline_mode<synchronous>, transform_indices = @transform_1, window_bounds = array<i64: 1, 32>}, {pipeline_mode = #tpu.pipeline_mode<synchronous>, transform_indices = @transform_2, window_bounds = array<i64: 1, 32>}, {pipeline_mode = #tpu.pipeline_mode<synchronous>, transform_indices = @transform_3, window_bounds = array<i64: 32, 32>}, {pipeline_mode = #tpu.pipeline_mode<synchronous>, transform_indices = @transform_4, window_bounds = array<i64: 1, 32>}, {transform_indices = @transform_5, window_bounds = array<i64: 16, 32>}]} {
    %c0_i32 = arith.constant 0 : i32
    %0 = arith.cmpi eq, %arg1, %c0_i32 : i32
    %1 = arith.extui %0 : i1 to i32
    %c0_i32_0 = arith.constant 0 : i32
    %2 = arith.cmpi ne, %1, %c0_i32_0 : i32
    scf.if %2 {
      %c0_16 = arith.constant 0 : index
      %c0_17 = arith.constant 0 : index
      %22 = vector.load %arg2[%c0_16, %c0_17] : memref<16x32xf32, #tpu.memory_space<vmem>>, vector<16x32xf32>
      %cst_18 = arith.constant dense<0.000000e+00> : vector<16xf32>
      %23 = vector.multi_reduction <add>, %22, %cst_18 [1] : vector<16x32xf32> to vector<16xf32>
      %24 = vector.shape_cast %23 : vector<16xf32> to vector<16x1xf32>
      %cst_19 = arith.constant 3.200000e+01 : f32
      %25 = vector.broadcast %cst_19 : f32 to vector<16x1xf32>
      %26 = arith.divf %24, %25 : vector<16x1xf32>
      %27 = vector.broadcast %26 : vector<16x1xf32> to vector<16x32xf32>
      %28 = arith.subf %22, %27 : vector<16x32xf32>
      %29 = arith.mulf %28, %28 : vector<16x32xf32>
      %cst_20 = arith.constant dense<0.000000e+00> : vector<16xf32>
      %30 = vector.multi_reduction <add>, %29, %cst_20 [1] : vector<16x32xf32> to vector<16xf32>
      %31 = vector.shape_cast %30 : vector<16xf32> to vector<16x1xf32>
      %cst_21 = arith.constant 3.100000e+01 : f32
      %32 = vector.broadcast %cst_21 : f32 to vector<16x1xf32>
      %33 = arith.divf %31, %32 : vector<16x1xf32>
      %c0_22 = arith.constant 0 : index
      %c0_23 = arith.constant 0 : index
      %34 = vector.load %arg8[%c0_22, %c0_23] : memref<16x1xf32, #tpu.memory_space<vmem>>, vector<16x1xf32>
      tpu.vector_store %arg8[%c0_22, %c0_23], %26 {strides = array<i32>} : memref<16x1xf32, #tpu.memory_space<vmem>>, vector<16x1xf32>,
      %35 = math.sqrt %33 : vector<16x1xf32>
      %cst_24 = arith.constant 9.99999997E-7 : f32
      %36 = vector.broadcast %cst_24 : f32 to vector<16x1xf32>
      %37 = arith.addf %35, %36 : vector<16x1xf32>
      %cst_25 = arith.constant 1.000000e+00 : f32
      %38 = vector.broadcast %cst_25 : f32 to vector<16x1xf32>
      %39 = arith.divf %38, %37 : vector<16x1xf32>
      %c0_26 = arith.constant 0 : index
      %c0_27 = arith.constant 0 : index
      %40 = vector.load %arg9[%c0_26, %c0_27] : memref<16x1xf32, #tpu.memory_space<vmem>>, vector<16x1xf32>
      tpu.vector_store %arg9[%c0_26, %c0_27], %39 {strides = array<i32>} : memref<16x1xf32, #tpu.memory_space<vmem>>, vector<16x1xf32>,
      %c0_28 = arith.constant 0 : index
      %c0_29 = arith.constant 0 : index
      %41 = vector.load %arg6[%c0_28, %c0_29] : memref<1x32xf32, #tpu.memory_space<vmem>>, vector<1x32xf32>
      %42 = vector.broadcast %41 : vector<1x32xf32> to vector<16x32xf32>
      %43 = arith.addf %22, %42 : vector<16x32xf32>
      %c0_30 = arith.constant 0 : index
      %c0_31 = arith.constant 0 : index
      %44 = vector.load %arg7[%c0_30, %c0_31] : memref<16x32xf32, #tpu.memory_space<vmem>>, vector<16x32xf32>
      tpu.vector_store %arg7[%c0_30, %c0_31], %43 {strides = array<i32>} : memref<16x32xf32, #tpu.memory_space<vmem>>, vector<16x32xf32>,
    } else {
    }
    %c0 = arith.constant 0 : index
    %c0_1 = arith.constant 0 : index
    %3 = vector.load %arg2[%c0, %c0_1] : memref<16x32xf32, #tpu.memory_space<vmem>>, vector<16x32xf32>
    %c0_2 = arith.constant 0 : index
    %c0_3 = arith.constant 0 : index
    %4 = vector.load %arg3[%c0_2, %c0_3] : memref<1x32xf32, #tpu.memory_space<vmem>>, vector<1x32xf32>
    %c0_4 = arith.constant 0 : index
    %c0_5 = arith.constant 0 : index
    %5 = vector.load %arg8[%c0_4, %c0_5] : memref<16x1xf32, #tpu.memory_space<vmem>>, vector<16x1xf32>
    %6 = vector.broadcast %5 : vector<16x1xf32> to vector<16x32xf32>
    %7 = arith.subf %3, %6 : vector<16x32xf32>
    %c0_6 = arith.constant 0 : index
    %c0_7 = arith.constant 0 : index
    %8 = vector.load %arg9[%c0_6, %c0_7] : memref<16x1xf32, #tpu.memory_space<vmem>>, vector<16x1xf32>
    %9 = vector.broadcast %8 : vector<16x1xf32> to vector<16x32xf32>
    %10 = arith.mulf %7, %9 : vector<16x32xf32>
    %11 = vector.broadcast %4 : vector<1x32xf32> to vector<16x32xf32>
    %12 = arith.mulf %11, %10 : vector<16x32xf32>
    %c0_8 = arith.constant 0 : index
    %c0_9 = arith.constant 0 : index
    %13 = vector.load %arg4[%c0_8, %c0_9] : memref<1x32xf32, #tpu.memory_space<vmem>>, vector<1x32xf32>
    %14 = vector.broadcast %13 : vector<1x32xf32> to vector<16x32xf32>
    %15 = arith.addf %12, %14 : vector<16x32xf32>
    %16 = arith.truncf %15 : vector<16x32xf32> to vector<16x32xbf16>
    %c0_10 = arith.constant 0 : index
    %c0_11 = arith.constant 0 : index
    %17 = vector.load %arg7[%c0_10, %c0_11] : memref<16x32xf32, #tpu.memory_space<vmem>>, vector<16x32xf32>
    %c0_12 = arith.constant 0 : index
    %c0_13 = arith.constant 0 : index
    %18 = vector.load %arg5[%c0_12, %c0_13] : memref<32x32xbf16, #tpu.memory_space<vmem>>, vector<32x32xbf16>
    %cst = arith.constant dense<0.000000e+00> : vector<16x32xf32>
    %19 = tpu.matmul %16, %18, %cst {dimension_numbers = #tpu.dot_dimension_numbers<[1], [0], [0], [1], [0, 0, 1, 1], [], []>} : vector<16x32xbf16>, vector<32x32xbf16>, vector<16x32xf32> -> vector<16x32xf32>
    %20 = arith.addf %17, %19 : vector<16x32xf32>
    %c0_14 = arith.constant 0 : index
    %c0_15 = arith.constant 0 : index
    %21 = vector.load %arg7[%c0_14, %c0_15] : memref<16x32xf32, #tpu.memory_space<vmem>>, vector<16x32xf32>
    tpu.vector_store %arg7[%c0_14, %c0_15], %20 {strides = array<i32>} : memref<16x32xf32, #tpu.memory_space<vmem>>, vector<16x32xf32>,
    return
  }
  func.func @transform_0(%arg0: i32, %arg1: i32) -> (i32, i32) {
    %c0_i32 = arith.constant 0 : i32
    %c0_i32_0 = arith.constant 0 : i32
    return %arg0, %c0_i32 : i32, i32
  }
  func.func @transform_1(%arg0: i32, %arg1: i32) -> (i32, i32) {
    %c0_i32 = arith.constant 0 : i32
    %c0_i32_0 = arith.constant 0 : i32
    %c0_i32_1 = arith.constant 0 : i32
    return %c0_i32, %c0_i32_0 : i32, i32
  }
  func.func @transform_2(%arg0: i32, %arg1: i32) -> (i32, i32) {
    %c0_i32 = arith.constant 0 : i32
    %c0_i32_0 = arith.constant 0 : i32
    %c0_i32_1 = arith.constant 0 : i32
    return %c0_i32, %c0_i32_0 : i32, i32
  }
  func.func @transform_3(%arg0: i32, %arg1: i32) -> (i32, i32) {
    %c0_i32 = arith.constant 0 : i32
    %c0_i32_0 = arith.constant 0 : i32
    %c0_i32_1 = arith.constant 0 : i32
    return %c0_i32, %c0_i32_0 : i32, i32
  }
  func.func @transform_4(%arg0: i32, %arg1: i32) -> (i32, i32) {
    %c0_i32 = arith.constant 0 : i32
    %c0_i32_0 = arith.constant 0 : i32
    %c0_i32_1 = arith.constant 0 : i32
    return %c0_i32, %c0_i32_0 : i32, i32
  }
  func.func @transform_5(%arg0: i32, %arg1: i32) -> (i32, i32) {
    %c0_i32 = arith.constant 0 : i32
    %c0_i32_0 = arith.constant 0 : i32
    return %arg0, %c0_i32 : i32, i32
  }
}

</mosaic_0001>

<llo_original>
// kernel: tpu_custom_call.1
$region0: #{tpu_custom_call.1}
  #allocation0 [shape = 'u32[]', space=smem, size = 0x4, offset = 0x4, fixed_abs, tag = 'smem constant byte address 0x4 - core index']
  #allocation1 [shape = 'u32[144,128]{1,0:T(1,128)}', space=vmem, size = 0x12000, scoped, tag = 'internal scratch']
  #allocation2 [shape = 'f32[16,1]{1,0:T(8,128)}', space=vmem, size = 0x2000, scoped, tag = 'scratch operand']
  #allocation3 [shape = 'f32[16,1]{1,0:T(8,128)}', space=vmem, size = 0x2000, scoped, tag = 'scratch operand']
  %s0 = inlined_call_operand.hbm [shape: f32[16,32], index: 0, kind: input, shape index: {}]
  %s1 = inlined_call_operand.vmem [shape: f32[1,32], index: 1, kind: input, shape index: {}]
  %s2 = inlined_call_operand.vmem [shape: f32[1,32], index: 2, kind: input, shape index: {}]
  %s3 = inlined_call_operand.hbm [shape: bf16[32,32], index: 3, kind: input, shape index: {}]
  %s4 = inlined_call_operand.vmem [shape: f32[1,32], index: 4, kind: input, shape index: {}]
  %s5 = inlined_call_operand.hbm [shape: f32[16,32], index: 5, kind: output, shape index: {}]
  %s6 = sld [smem:[#allocation0]]
  $region42: #{tpu_custom_call.1} parent=0
    _
  %s8 = ssub.s32 1, %s6
  %s9 = scalar_select 0, %s8, %s6
  $region1: #{tpu_custom_call.1} parent=0
    #allocation4 [shape = 'u8[8192]{0}', space=vmem, size = 0x2000, scoped, tag = 'input window, operand 0, single buffered']
    #allocation5 [shape = 's32[1]{0}', space=sflag, size = 0x4, scoped, tag = 'scoped memory for tpu_custom_call.1']
    #allocation6 [shape = 's32[1]{0}', space=sflag, size = 0x4, scoped, tag = 'scoped memory for tpu_custom_call.1']
    #allocation7 [shape = 'u8[8192]{0}', space=vmem, size = 0x2000, scoped, tag = 'input window, operand 3, single buffered']
    #allocation8 [shape = 's32[1]{0}', space=sflag, size = 0x4, scoped, tag = 'scoped memory for tpu_custom_call.1']
    #allocation9 [shape = 'u8[8192]{0}', space=vmem, size = 0x2000, scoped, tag = 'output window, operand 0, single buffered']
    %10 = vsyncpa [#allocation5], 0
    %11 = vsyncpa [#allocation8], 0
    %12 = vsyncpa [#allocation6], 0
    // Predicated region
    $region2: #{tpu_custom_call.1} parent=1 // pred_check
      _
    $region3: #{tpu_custom_call.1} parent=1 // pred_check_branch
      %14 = sbr.rel (0) target = $region5
    $region4: #{tpu_custom_call.1} parent=1 // pred_region
      %s16 = ssub.s32 256, 256
      %17 = vsyncadd [#allocation5], %s16
      %s18 = sshll.u32 [#allocation4], 4
      %s19 = int_to_ptr.vmem [resolvable:$true] %s18
      %24 = dma.hbm_to_vmem [thread:$0]  %s0, 256, %s19, [#allocation5], 128, 128, 8
    $region5: #{tpu_custom_call.1} parent=1 // pred_fallthru
      _
    // Predicated region
    $region6: #{tpu_custom_call.1} parent=1 // pred_check
      _
    $region7: #{tpu_custom_call.1} parent=1 // pred_check_branch
      %26 = sbr.rel (0) target = $region9
    $region8: #{tpu_custom_call.1} parent=1 // pred_region
      _
    $region9: #{tpu_custom_call.1} parent=1 // pred_fallthru
      _
    // Predicated region
    $region10: #{tpu_custom_call.1} parent=1 // pred_check
      _
    $region11: #{tpu_custom_call.1} parent=1 // pred_check_branch
      %28 = sbr.rel (0) target = $region13
    $region12: #{tpu_custom_call.1} parent=1 // pred_region
      _
    $region13: #{tpu_custom_call.1} parent=1 // pred_fallthru
      _
    // Predicated region
    $region14: #{tpu_custom_call.1} parent=1 // pred_check
      _
    $region15: #{tpu_custom_call.1} parent=1 // pred_check_branch
      %30 = sbr.rel (0) target = $region17
    $region16: #{tpu_custom_call.1} parent=1 // pred_region
      %s32 = ssub.s32 256, 256
      %33 = vsyncadd [#allocation8], %s32
      %s34 = sshll.u32 [#allocation7], 4
      %s35 = int_to_ptr.vmem [resolvable:$true] %s34
      %40 = dma.hbm_to_vmem [thread:$0]  %s3, 256, %s35, [#allocation8], 64, 64, 4
    $region17: #{tpu_custom_call.1} parent=1 // pred_fallthru
      _
    // Predicated region
    $region18: #{tpu_custom_call.1} parent=1 // pred_check
      _
    $region19: #{tpu_custom_call.1} parent=1 // pred_check_branch
      %42 = sbr.rel (0) target = $region21
    $region20: #{tpu_custom_call.1} parent=1 // pred_region
      _
    $region21: #{tpu_custom_call.1} parent=1 // pred_fallthru
      _
    // Predicated region
    $region22: #{tpu_custom_call.1} parent=1 // pred_check
      _
    $region23: #{tpu_custom_call.1} parent=1 // pred_check_branch
      %44 = sbr.rel (0) target = $region25
    $region24: #{tpu_custom_call.1} parent=1 // pred_region
      %45 = dma.done [#allocation5], 256
    $region25: #{tpu_custom_call.1} parent=1 // pred_fallthru
      _
    // Predicated region
    $region26: #{tpu_custom_call.1} parent=1 // pred_check
      _
    $region27: #{tpu_custom_call.1} parent=1 // pred_check_branch
      %47 = sbr.rel (0) target = $region29
    $region28: #{tpu_custom_call.1} parent=1 // pred_region
      %48 = dma.done [#allocation8], 256
    $region29: #{tpu_custom_call.1} parent=1 // pred_fallthru
      _
    %p50 = scmp.eq.s32.totalorder 0, 0
    // Predicated region
    $region30: #{tpu_custom_call.1} parent=1 // pred_check
      %p51 = pneg %p50
    $region31: #{tpu_custom_call.1} parent=1 // pred_check_branch
      %53 = sbr.rel (%p51) target = $region33
    $region32: #{tpu_custom_call.1} parent=1 // pred_region
      %v54 = vld [vmem:[#allocation4] sm:$0xff]
      %v55 = vld [vmem:[#allocation4 + $0x8] sm:$0xff]
      %vm56 = vcmask 261120
      %v57 = vsel %vm56, %v54, 0.0
      %58 = vadd.xlane.f32.xlu0 %v57
      %v59 = vpop.xlane.xlu0 %58
      %v60 = vsel %vm56, %v55, 0.0
      %61 = vadd.xlane.f32.xlu0 %v60
      %v62 = vpop.xlane.xlu0 %61
      %v63 = vrcp.pop 32.0
      %v64 = vmul.f32 %v59, %v63
      %v65 = vmul.f32 %v62, %v63
      %v66 = vsub.f32 %v54, %v64
      %v67 = vsub.f32 %v55, %v65
      %v68 = vmul.f32 %v66, %v66
      %v69 = vmul.f32 %v67, %v67
      %v70 = vsel %vm56, %v68, 0.0
      %71 = vadd.xlane.f32.xlu0 %v70
      %v72 = vpop.xlane.xlu0 %71
      %v73 = vsel %vm56, %v69, 0.0
      %74 = vadd.xlane.f32.xlu0 %v73
      %v75 = vpop.xlane.xlu0 %74
      %v76 = vrcp.pop 31.0
      %v77 = vmul.f32 %v72, %v76
      %v78 = vmul.f32 %v75, %v76
      %vm79 = vcmask 7168
      %80 = vst.msk [vmem:[#allocation2] sm:$0xff] %vm79, %v64
      %81 = vst.msk [vmem:[#allocation2 + $0x8] sm:$0xff] %vm79, %v65
      %v82 = vrsqrt.pop %v77
      %v83 = vmul.f32 %v77, %v82
      %vm84 = vcmp.eq.f32.partialorder %v77, inf
      %v85 = vsel %vm84, %v77, %v83
      %vm86 = vcmp.eq.f32.partialorder %v77, 0.0
      %v87 = vand.u32 %v77, 2147483648
      %v88 = vsel %vm86, %v87, %v85
      %v89 = vrsqrt.pop %v78
      %v90 = vmul.f32 %v78, %v89
      %vm91 = vcmp.eq.f32.partialorder %v78, inf
      %v92 = vsel %vm91, %v78, %v90
      %vm93 = vcmp.eq.f32.partialorder %v78, 0.0
      %v94 = vand.u32 %v78, 2147483648
      %v95 = vsel %vm93, %v94, %v92
      %v96 = vadd.f32 %v88, 1e-06
      %v97 = vadd.f32 %v95, 1e-06
      %v98 = vrcp.pop %v96
      %v99 = vmul.f32 1.0, %v98
      %v100 = vrcp.pop %v97
      %v101 = vmul.f32 1.0, %v100
      %102 = vst.msk [vmem:[#allocation3] sm:$0xff] %vm79, %v99
      %103 = vst.msk [vmem:[#allocation3 + $0x8] sm:$0xff] %vm79, %v101
      %v104 = vld [vmem:[%s4] sm:$0x1]
      %v106 = vlaneseq
      %v107 = vshrl.u32 %v106, 7
      %v108 = vsub.s32 0, %v107
      %v109 = vrot.slane %v104, %v108
      %v111 = vadd.f32 %v54, %v109
      %v112 = vadd.f32 %v55, %v109
      %113 = vst.msk [vmem:[#allocation9] sm:$0xff] %vm56, %v111
      %114 = vst.msk [vmem:[#allocation9 + $0x8] sm:$0xff] %vm56, %v112
    $region33: #{tpu_custom_call.1} parent=1 // pred_fallthru
      _
    %v115 = vld [vmem:[#allocation4] sm:$0xff]
    %v116 = vld [vmem:[#allocation4 + $0x8] sm:$0xff]
    %v117 = vld [vmem:[%s1] sm:$0x1]
    %v118 = vld [vmem:[#allocation2] sm:$0xff]
    %v119 = vld [vmem:[#allocation2 + $0x8] sm:$0xff]
    %121 = vset.pattern.permute.xlu0 0
    %122 = vperm.xlu0 %121, %v118
    %v123 = vpop.permute.xlu0 %122
    %126 = vset.pattern.permute.xlu0 0
    %127 = vperm.xlu0 %126, %v119
    %v128 = vpop.permute.xlu0 %127
    %v130 = vsub.f32 %v115, %v123
    %v131 = vsub.f32 %v116, %v128
    %v132 = vld [vmem:[#allocation3] sm:$0xff]
    %v133 = vld [vmem:[#allocation3 + $0x8] sm:$0xff]
    %135 = vset.pattern.permute.xlu0 0
    %136 = vperm.xlu0 %135, %v132
    %v137 = vpop.permute.xlu0 %136
    %140 = vset.pattern.permute.xlu0 0
    %141 = vperm.xlu0 %140, %v133
    %v142 = vpop.permute.xlu0 %141
    %v144 = vmul.f32 %v130, %v137
    %v145 = vmul.f32 %v131, %v142
    %v147 = vlaneseq
    %v148 = vshrl.u32 %v147, 7
    %v149 = vsub.s32 0, %v148
    %v150 = vrot.slane %v117, %v149
    %v152 = vmul.f32 %v150, %v144
    %v153 = vmul.f32 %v150, %v145
    %v154 = vld [vmem:[%s2] sm:$0x1]
    %v156 = vlaneseq
    %v157 = vshrl.u32 %v156, 7
    %v158 = vsub.s32 0, %v157
    %v159 = vrot.slane %v154, %v158
    %v161 = vadd.f32 %v152, %v159
    %v162 = vadd.f32 %v153, %v159
    %v163 = vpack.c.bf16 %v162, %v161
    %v164 = vld [vmem:[#allocation9] sm:$0xff]
    %v165 = vld [vmem:[#allocation9 + $0x8] sm:$0xff]
    %v166 = vld [vmem:[#allocation7] sm:$0xf]
    %v167 = vld [vmem:[#allocation7 + $0x4] sm:$0xf]
    %v168 = vld [vmem:[#allocation7 + $0x8] sm:$0xf]
    %v169 = vld [vmem:[#allocation7 + $0xc] sm:$0xf]
    %v174 = vunpack.c.l.b16 %v166
    %v175 = vunpack.c.l.b16 %v167
    %v176 = vunpack.c.l.b16 %v168
    %v177 = vunpack.c.l.b16 %v169
    %v178 = vpack.c.b16 %v175, %v174
    %v179 = vpack.c.b16 %v177, %v176
    %vm182 = vcmask 261120
    %v184 = vsel %vm182, %v163, 0
    %186 = vmatprep.subr.bf16.mxu0 0
    %187 = vmatpush1.bf16.msra.mxu0 %v178
    %188 = vmatprep.subr.bf16.mxu0 0
    %189 = vmatpush1.bf16.msra.mxu0 %v179
    %190 = vmatprep.subr.bf16.mxu0 0
    %191 = vmatpush1.bf16.msra.mxu0 0
    %192 = vmatprep.subr.bf16.mxu0 0
    %193 = vmatpush1.bf16.msra.mxu0 0
    %194 = vmatprep.subr.bf16.mxu0 0
    %195 = vmatpush1.bf16.msra.mxu0 0
    %196 = vmatprep.subr.bf16.mxu0 0
    %197 = vmatpush1.bf16.msra.mxu0 0
    %198 = vmatprep.subr.bf16.mxu0 0
    %199 = vmatpush1.bf16.msra.mxu0 0
    %200 = vmatprep.subr.bf16.mxu0 0
    %201 = vmatpush1.bf16.msra.mxu0 0
    %202 = vmatprep.subr.bf16.mxu0 0
    %203 = vmatpush1.bf16.msra.mxu0 0
    %204 = vmatprep.subr.bf16.mxu0 0
    %205 = vmatpush1.bf16.msra.mxu0 0
    %206 = vmatprep.subr.bf16.mxu0 0
    %207 = vmatpush1.bf16.msra.mxu0 0
    %208 = vmatprep.subr.bf16.mxu0 0
    %209 = vmatpush1.bf16.msra.mxu0 0
    %210 = vmatprep.subr.bf16.mxu0 0
    %211 = vmatpush1.bf16.msra.mxu0 0
    %212 = vmatprep.subr.bf16.mxu0 0
    %213 = vmatpush1.bf16.msra.mxu0 0
    %214 = vmatprep.subr.bf16.mxu0 0
    %215 = vmatpush1.bf16.msra.mxu0 0
    %216 = vmatprep.subr.bf16.mxu0 0
    %217 = vmatpush1.bf16.msra.mxu0 0
    %218 = vmatprep.mubr.bf16.mxu0 0
    %219 = vmatmul.mubr.bf16.gmra.mrb[0].mxu0 %v184
    %v220 = vpop.f32.mrb[0].mxu0
    %v221 = vadd.f32 0.0, %v220
    %v222 = vpop.f32.mrb[0].mxu0
    %v223 = vpop.f32.mrb[0].mxu0
    %v224 = vadd.f32 0.0, %v223
    %v225 = vpop.f32.mrb[0].mxu0
    %226 = vdwg.mxu0
    %v227 = vadd.f32 %v164, %v221
    %v228 = vadd.f32 %v165, %v224
    %229 = vst.msk [vmem:[#allocation9] sm:$0xff] %vm182, %v227
    %230 = vst.msk [vmem:[#allocation9 + $0x8] sm:$0xff] %vm182, %v228
    // Predicated region
    $region34: #{tpu_custom_call.1} parent=1 // pred_check
      _
    $region35: #{tpu_custom_call.1} parent=1 // pred_check_branch
      %232 = sbr.rel (0) target = $region37
    $region36: #{tpu_custom_call.1} parent=1 // pred_region
      %s234 = ssub.s32 256, 256
      %235 = vsyncadd [#allocation6], %s234
      %s236 = sshll.u32 [#allocation9], 4
      %s237 = int_to_ptr.vmem [resolvable:$true] %s236
      %242 = dma.vmem_to_hbm [thread:$0]  %s237, 256, %s5, [#allocation6], 128, 128, 8
    $region37: #{tpu_custom_call.1} parent=1 // pred_fallthru
      _
    // Predicated region
    $region38: #{tpu_custom_call.1} parent=1 // pred_check
      _
    $region39: #{tpu_custom_call.1} parent=1 // pred_check_branch
      %244 = sbr.rel (0) target = $region41
    $region40: #{tpu_custom_call.1} parent=1 // pred_region
      %245 = dma.done [#allocation6], 256
    $region41: #{tpu_custom_call.1} parent=1 // pred_fallthru
      _
    %246 = vsyncpa [#allocation5], 1
    %247 = vsyncpa [#allocation8], 1
    %248 = vsyncpa [#allocation6], 1

</llo_original>
